<compile_context>
chip_gen: v5e
topology: v5e:2x2
jax: 0.10.0
libtpu: 0.0.40
codegen_flags: <defaults>
</compile_context>

<pallas_src>
import jax
import jax.numpy as jnp
from jax.experimental import pallas as pl
from jax.experimental.pallas import tpu as pltpu


def _make_block_kernel(H, W, K, nb, compute_dtype):
    HW = H * W

    def left_roll(z, s):
        # out[:, p] = z[:, (p + s) % HW]  — lane left-shift by s (XLU rotate).
        if s == 0:
            return z
        if HW % 128 == 0:
            return pltpu.roll(z, HW - s, axis=1)
        return jnp.roll(z, -s, axis=1)  # fallback for lane-unaligned H*W

    def patches(z):
        # z: (C, HW). Returns (K*K*C, HW) where row (kh*K+kw)*C + c is channel c
        # left-shifted by kh*W + kw. Matches the (co, kh, kw, ci) weight flatten.
        return jnp.concatenate(
            [left_roll(z, kh * W + kw) for kh in range(K) for kw in range(K)],
            axis=0)

    def kernel(x_ref, w1_ref, b1_ref, w2_ref, b2_ref, o_ref):
        # x_ref : (nb, Cin, HW)      lane-dense input block (flattened H*W grid)
        # w1_ref: (Cout, K*K*Cin)    transposed-GEMM weight layout
        # b1_ref: (Cout, 1)
        # w2_ref: (Cout, K*K*Cout)
        # b2_ref: (Cout, 1)
        # o_ref : (nb, Cout, HW)     full flattened grid; wrapper crops to (H2, W2)
        w1t = w1_ref[...].astype(compute_dtype)
        w2t = w2_ref[...].astype(compute_dtype)
        b1 = b1_ref[...].astype(jnp.float32)   # epilogue stays f32 (v5e-safe)
        b2 = b2_ref[...].astype(jnp.float32)

        for i in range(nb):                       # static unroll; nb kept small
            x = x_ref[i].astype(compute_dtype)    # (Cin, HW), lane-dense
            # conv1 + bias + ReLU: single fused MXU contraction, lane-dense result
            y1 = jnp.dot(w1t, patches(x), preferred_element_type=jnp.float32)
            y1 = jnp.maximum(y1 + b1, 0.0)        # (Cout, HW)
            # conv2 + bias: same fused pattern on the still-flattened grid
            y2 = jnp.dot(w2t, patches(y1.astype(compute_dtype)),
                         preferred_element_type=jnp.float32) + b2
            o_ref[i] = y2.astype(o_ref.dtype)     # unmasked, lane-dense store

    return kernel


def _tpu_core_info():
    """Returns (tensorcores_per_chip, has_bf16_vpu); conservative fallback."""
    try:
        kind = jax.devices()[0].device_kind.lower()
    except Exception:
        return 1, False
    is_v7 = ("v7" in kind) or ("tpu7" in kind)
    is_v5e = ("v5e" in kind) or ("v5 lite" in kind) or ("v5lite" in kind)
    return (2 if is_v7 else 1), (not is_v5e)


def _pick_images_per_step(N, Cin, Cout, HW, in_itemsize, out_itemsize,
                          min_steps, vmem_budget_bytes):
    """nb only amortizes the ~0.35us/step overhead and sizes DMA blocks; it is
    NOT an MXU-shape knob (the MXU is barely utilized at these channel counts)."""
    # Rough per-image VMEM working set: f32 patches + intermediates, plus the
    # double-buffered input/output blocks.
    per_image = (10 * Cin + 11 * Cout) * HW * 4
    per_image += 2 * (Cin * in_itemsize + Cout * out_itemsize) * HW
    nb_cap = max(1, int(vmem_budget_bytes // per_image))
    nb_cap = min(nb_cap, 8)      # also bounds kernel unrolling / live ranges
    best = 1
    for nb in range(1, N + 1):
        if N % nb:
            continue
        if nb > nb_cap or (N // nb) < min_steps:
            break
        best = nb
    return best


def block_forward(x_nchw, w1_oihw, b1, w2_oihw, b2, *,
                  images_per_step=None, compute_dtype=None):
    """Pallas forward of Block. x_nchw: (N, Cin, H, W). Returns (N, Cout, H-4, W-4)."""
    N, Cin, H, W = x_nchw.shape
    Cout = w1_oihw.shape[0]
    K = 3
    H2, W2 = H - 2 * (K - 1), W - 2 * (K - 1)
    HW = H * W

    num_cores, has_bf16_vpu = _tpu_core_info()

    if compute_dtype is None:
        # bf16 MXU operands only pay off on v6e/v7x and only for bf16 inputs;
        # v5e (no bf16 VPU/EUP) and all f32 inputs stay strictly f32.
        compute_dtype = (jnp.bfloat16
                         if (x_nchw.dtype == jnp.bfloat16 and has_bf16_vpu)
                         else jnp.float32)

    # Byte budgets: v7x has 64 MiB physical VMEM (32 MiB scoped default),
    # v5e/v6e have 128 MiB.
    if num_cores >= 2:
        vmem_budget, vmem_limit = 12 * 1024 * 1024, 32 * 1024 * 1024
    else:
        vmem_budget, vmem_limit = 24 * 1024 * 1024, 64 * 1024 * 1024

    if images_per_step is None:
        images_per_step = _pick_images_per_step(
            N, Cin, Cout, HW,
            in_itemsize=x_nchw.dtype.itemsize,
            out_itemsize=x_nchw.dtype.itemsize,
            min_steps=num_cores, vmem_budget_bytes=vmem_budget)
    nb = images_per_step
    assert N % nb == 0, (N, nb)

    # Free row-major reshape of the activations (no HBM transpose). The weight
    # reshapes are tiny (K*K*C*Cout elements each).
    x_flat = x_nchw.reshape(N, Cin, HW)
    w1t = jnp.transpose(w1_oihw, (0, 2, 3, 1)).reshape(Cout, K * K * Cin)
    w2t = jnp.transpose(w2_oihw, (0, 2, 3, 1)).reshape(Cout, K * K * Cout)
    b1c = b1.reshape(Cout, 1)
    b2c = b2.reshape(Cout, 1)

    kernel = _make_block_kernel(H, W, K, nb, compute_dtype)

    out_flat = pl.pallas_call(
        kernel,
        out_shape=jax.ShapeDtypeStruct((N, Cout, HW), x_nchw.dtype),
        grid_spec=pltpu.PrefetchScalarGridSpec(
            num_scalar_prefetch=0,
            grid=(N // nb,),
            in_specs=[
                pl.BlockSpec((nb, Cin, HW), lambda n: (n, 0, 0)),
                pl.BlockSpec((Cout, K * K * Cin), lambda n: (0, 0)),
                pl.BlockSpec((Cout, 1), lambda n: (0, 0)),
                pl.BlockSpec((Cout, K * K * Cout), lambda n: (0, 0)),
                pl.BlockSpec((Cout, 1), lambda n: (0, 0)),
            ],
            out_specs=pl.BlockSpec((nb, Cout, HW), lambda n: (n, 0, 0)),
        ),
        compiler_params=pltpu.CompilerParams(
            dimension_semantics=("parallel",),
            vmem_limit_bytes=vmem_limit,
        ),
    )(x_flat, w1t, b1c, w2t, b2c)

    # Free row-major reshape back to the (H, W) grid, then crop the VALID region
    # (the only place the garbage columns/rows are dropped).
    return out_flat.reshape(N, Cout, H, W)[:, :, :H2, :W2]


def _reference_forward(x_nchw, w1_oihw, b1, w2_oihw, b2):
    """Pure-JAX reference (lax conv) mirroring PyTorch Conv2d semantics."""
    dn = jax.lax.conv_dimension_numbers(x_nchw.shape, w1_oihw.shape,
                                        ("NCHW", "OIHW", "NCHW"))
    y = jax.lax.conv_general_dilated(x_nchw, w1_oihw, (1, 1), "VALID",
                                     dimension_numbers=dn)
    y = y + b1.reshape(1, -1, 1, 1)
    y = jnp.maximum(y, 0.0)
    dn2 = jax.lax.conv_dimension_numbers(y.shape, w2_oihw.shape,
                                         ("NCHW", "OIHW", "NCHW"))
    y = jax.lax.conv_general_dilated(y, w2_oihw, (1, 1), "VALID",
                                     dimension_numbers=dn2)
    y = y + b2.reshape(1, -1, 1, 1)
    return y


if __name__ == "__main__":
    # Small shapes consistent with the module's forward:
    #   x: (N=2, Cin=4, H=16, W=16), Cout=8
    N, Cin, Cout, H, W = 2, 4, 8, 16, 16
    key = jax.random.PRNGKey(0)
    kx, kw1, kb1, kw2, kb2 = jax.random.split(key, 5)

    x = jax.random.normal(kx, (N, Cin, H, W), jnp.float32)
    w1 = jax.random.normal(kw1, (Cout, Cin, 3, 3), jnp.float32) * 0.1
    b1 = jax.random.normal(kb1, (Cout,), jnp.float32) * 0.1
    w2 = jax.random.normal(kw2, (Cout, Cout, 3, 3), jnp.float32) * 0.1
    b2 = jax.random.normal(kb2, (Cout,), jnp.float32) * 0.1

    out = block_forward(x, w1, b1, w2, b2)
    out = jax.block_until_ready(out)

    ref = jax.block_until_ready(_reference_forward(x, w1, b1, w2, b2))
    assert out.shape == (N, Cout, H - 4, W - 4), out.shape
    assert jnp.allclose(out, ref, atol=1e-4, rtol=1e-4), float(
        jnp.max(jnp.abs(out - ref)))

    print("KERNEL_OK")
</pallas_src>

<mosaic_0001>
module attributes {stable_mosaic.version = 11 : i64} {
  func.func @kernel(%arg0: i32, %arg1: memref<2x4x256xf32, #tpu.memory_space<vmem>>, %arg2: memref<8x36xf32, #tpu.memory_space<vmem>>, %arg3: memref<8x1xf32, #tpu.memory_space<vmem>>, %arg4: memref<8x72xf32, #tpu.memory_space<vmem>>, %arg5: memref<8x1xf32, #tpu.memory_space<vmem>>, %arg6: memref<2x8x256xf32, #tpu.memory_space<vmem>>) attributes {dimension_semantics = [#tpu.dimension_semantics<parallel>], iteration_bounds = array<i64: 1>, scalar_prefetch = 0 : i64, scratch_operands = 0 : i64, tpu.core_type = #tpu.core_type<tc>, window_params = [{transform_indices = @transform_0, window_bounds = array<i64: 2, 4, 256>}, {pipeline_mode = #tpu.pipeline_mode<synchronous>, transform_indices = @transform_1, window_bounds = array<i64: 8, 36>}, {pipeline_mode = #tpu.pipeline_mode<synchronous>, transform_indices = @transform_2, window_bounds = array<i64: 8, 1>}, {pipeline_mode = #tpu.pipeline_mode<synchronous>, transform_indices = @transform_3, window_bounds = array<i64: 8, 72>}, {pipeline_mode = #tpu.pipeline_mode<synchronous>, transform_indices = @transform_4, window_bounds = array<i64: 8, 1>}, {transform_indices = @transform_5, window_bounds = array<i64: 2, 8, 256>}]} {
    %c0 = arith.constant 0 : index
    %c0_0 = arith.constant 0 : index
    %0 = vector.load %arg2[%c0, %c0_0] : memref<8x36xf32, #tpu.memory_space<vmem>>, vector<8x36xf32>
    %c0_1 = arith.constant 0 : index
    %c0_2 = arith.constant 0 : index
    %1 = vector.load %arg4[%c0_1, %c0_2] : memref<8x72xf32, #tpu.memory_space<vmem>>, vector<8x72xf32>
    %c0_3 = arith.constant 0 : index
    %c0_4 = arith.constant 0 : index
    %2 = vector.load %arg3[%c0_3, %c0_4] : memref<8x1xf32, #tpu.memory_space<vmem>>, vector<8x1xf32>
    %c0_5 = arith.constant 0 : index
    %c0_6 = arith.constant 0 : index
    %3 = vector.load %arg5[%c0_5, %c0_6] : memref<8x1xf32, #tpu.memory_space<vmem>>, vector<8x1xf32>
    %c0_7 = arith.constant 0 : index
    %c0_8 = arith.constant 0 : index
    %c0_9 = arith.constant 0 : index
    %4 = vector.load %arg1[%c0_7, %c0_8, %c0_9] : memref<2x4x256xf32, #tpu.memory_space<vmem>>, vector<1x4x256xf32>
    %5 = vector.shape_cast %4 : vector<1x4x256xf32> to vector<4x256xf32>
    %c255_i32 = arith.constant 255 : i32
    %6 = tpu.dynamic_rotate %5 by %c255_i32 dim 1 : vector<4x256xf32>, i32 -> vector<4x256xf32>
    %c254_i32 = arith.constant 254 : i32
    %7 = tpu.dynamic_rotate %5 by %c254_i32 dim 1 : vector<4x256xf32>, i32 -> vector<4x256xf32>
    %c240_i32 = arith.constant 240 : i32
    %8 = tpu.dynamic_rotate %5 by %c240_i32 dim 1 : vector<4x256xf32>, i32 -> vector<4x256xf32>
    %c239_i32 = arith.constant 239 : i32
    %9 = tpu.dynamic_rotate %5 by %c239_i32 dim 1 : vector<4x256xf32>, i32 -> vector<4x256xf32>
    %c238_i32 = arith.constant 238 : i32
    %10 = tpu.dynamic_rotate %5 by %c238_i32 dim 1 : vector<4x256xf32>, i32 -> vector<4x256xf32>
    %c224_i32 = arith.constant 224 : i32
    %11 = tpu.dynamic_rotate %5 by %c224_i32 dim 1 : vector<4x256xf32>, i32 -> vector<4x256xf32>
    %c223_i32 = arith.constant 223 : i32
    %12 = tpu.dynamic_rotate %5 by %c223_i32 dim 1 : vector<4x256xf32>, i32 -> vector<4x256xf32>
    %c222_i32 = arith.constant 222 : i32
    %13 = tpu.dynamic_rotate %5 by %c222_i32 dim 1 : vector<4x256xf32>, i32 -> vector<4x256xf32>
    %14 = tpu.concatenate %5, %6, %7, %8, %9, %10, %11, %12, %13 in 0 : vector<4x256xf32>, vector<4x256xf32>, vector<4x256xf32>, vector<4x256xf32>, vector<4x256xf32>, vector<4x256xf32>, vector<4x256xf32>, vector<4x256xf32>, vector<4x256xf32> -> vector<36x256xf32>
    %cst = arith.constant dense<0.000000e+00> : vector<8x256xf32>
    %15 = tpu.matmul %0, %14, %cst {dimension_numbers = #tpu.dot_dimension_numbers<[1], [0], [0], [1], [0, 0, 1, 1], [], []>} : vector<8x36xf32>, vector<36x256xf32>, vector<8x256xf32> -> vector<8x256xf32>
    %16 = vector.broadcast %2 : vector<8x1xf32> to vector<8x256xf32>
    %17 = arith.addf %15, %16 : vector<8x256xf32>
    %cst_10 = arith.constant 0.000000e+00 : f32
    %18 = vector.broadcast %cst_10 : f32 to vector<8x256xf32>
    %19 = arith.maximumf %17, %18 : vector<8x256xf32>
    %c255_i32_11 = arith.constant 255 : i32
    %20 = tpu.dynamic_rotate %19 by %c255_i32_11 dim 1 : vector<8x256xf32>, i32 -> vector<8x256xf32>
    %c254_i32_12 = arith.constant 254 : i32
    %21 = tpu.dynamic_rotate %19 by %c254_i32_12 dim 1 : vector<8x256xf32>, i32 -> vector<8x256xf32>
    %c240_i32_13 = arith.constant 240 : i32
    %22 = tpu.dynamic_rotate %19 by %c240_i32_13 dim 1 : vector<8x256xf32>, i32 -> vector<8x256xf32>
    %c239_i32_14 = arith.constant 239 : i32
    %23 = tpu.dynamic_rotate %19 by %c239_i32_14 dim 1 : vector<8x256xf32>, i32 -> vector<8x256xf32>
    %c238_i32_15 = arith.constant 238 : i32
    %24 = tpu.dynamic_rotate %19 by %c238_i32_15 dim 1 : vector<8x256xf32>, i32 -> vector<8x256xf32>
    %c224_i32_16 = arith.constant 224 : i32
    %25 = tpu.dynamic_rotate %19 by %c224_i32_16 dim 1 : vector<8x256xf32>, i32 -> vector<8x256xf32>
    %c223_i32_17 = arith.constant 223 : i32
    %26 = tpu.dynamic_rotate %19 by %c223_i32_17 dim 1 : vector<8x256xf32>, i32 -> vector<8x256xf32>
    %c222_i32_18 = arith.constant 222 : i32
    %27 = tpu.dynamic_rotate %19 by %c222_i32_18 dim 1 : vector<8x256xf32>, i32 -> vector<8x256xf32>
    %28 = tpu.concatenate %19, %20, %21, %22, %23, %24, %25, %26, %27 in 0 : vector<8x256xf32>, vector<8x256xf32>, vector<8x256xf32>, vector<8x256xf32>, vector<8x256xf32>, vector<8x256xf32>, vector<8x256xf32>, vector<8x256xf32>, vector<8x256xf32> -> vector<72x256xf32>
    %cst_19 = arith.constant dense<0.000000e+00> : vector<8x256xf32>
    %29 = tpu.matmul %1, %28, %cst_19 {dimension_numbers = #tpu.dot_dimension_numbers<[1], [0], [0], [1], [0, 0, 1, 1], [], []>} : vector<8x72xf32>, vector<72x256xf32>, vector<8x256xf32> -> vector<8x256xf32>
    %30 = vector.broadcast %3 : vector<8x1xf32> to vector<8x256xf32>
    %31 = arith.addf %29, %30 : vector<8x256xf32>
    %c0_20 = arith.constant 0 : index
    %c0_21 = arith.constant 0 : index
    %c0_22 = arith.constant 0 : index
    %32 = vector.load %arg6[%c0_20, %c0_21, %c0_22] : memref<2x8x256xf32, #tpu.memory_space<vmem>>, vector<1x8x256xf32>
    %33 = vector.shape_cast %32 : vector<1x8x256xf32> to vector<8x256xf32>
    %34 = vector.shape_cast %31 : vector<8x256xf32> to vector<1x8x256xf32>
    tpu.vector_store %arg6[%c0_20, %c0_21, %c0_22], %34 {strides = array<i32>} : memref<2x8x256xf32, #tpu.memory_space<vmem>>, vector<1x8x256xf32>,
    %c1 = arith.constant 1 : index
    %c0_23 = arith.constant 0 : index
    %c0_24 = arith.constant 0 : index
    %35 = vector.load %arg1[%c1, %c0_23, %c0_24] : memref<2x4x256xf32, #tpu.memory_space<vmem>>, vector<1x4x256xf32>
    %36 = vector.shape_cast %35 : vector<1x4x256xf32> to vector<4x256xf32>
    %c255_i32_25 = arith.constant 255 : i32
    %37 = tpu.dynamic_rotate %36 by %c255_i32_25 dim 1 : vector<4x256xf32>, i32 -> vector<4x256xf32>
    %c254_i32_26 = arith.constant 254 : i32
    %38 = tpu.dynamic_rotate %36 by %c254_i32_26 dim 1 : vector<4x256xf32>, i32 -> vector<4x256xf32>
    %c240_i32_27 = arith.constant 240 : i32
    %39 = tpu.dynamic_rotate %36 by %c240_i32_27 dim 1 : vector<4x256xf32>, i32 -> vector<4x256xf32>
    %c239_i32_28 = arith.constant 239 : i32
    %40 = tpu.dynamic_rotate %36 by %c239_i32_28 dim 1 : vector<4x256xf32>, i32 -> vector<4x256xf32>
    %c238_i32_29 = arith.constant 238 : i32
    %41 = tpu.dynamic_rotate %36 by %c238_i32_29 dim 1 : vector<4x256xf32>, i32 -> vector<4x256xf32>
    %c224_i32_30 = arith.constant 224 : i32
    %42 = tpu.dynamic_rotate %36 by %c224_i32_30 dim 1 : vector<4x256xf32>, i32 -> vector<4x256xf32>
    %c223_i32_31 = arith.constant 223 : i32
    %43 = tpu.dynamic_rotate %36 by %c223_i32_31 dim 1 : vector<4x256xf32>, i32 -> vector<4x256xf32>
    %c222_i32_32 = arith.constant 222 : i32
    %44 = tpu.dynamic_rotate %36 by %c222_i32_32 dim 1 : vector<4x256xf32>, i32 -> vector<4x256xf32>
    %45 = tpu.concatenate %36, %37, %38, %39, %40, %41, %42, %43, %44 in 0 : vector<4x256xf32>, vector<4x256xf32>, vector<4x256xf32>, vector<4x256xf32>, vector<4x256xf32>, vector<4x256xf32>, vector<4x256xf32>, vector<4x256xf32>, vector<4x256xf32> -> vector<36x256xf32>
    %cst_33 = arith.constant dense<0.000000e+00> : vector<8x256xf32>
    %46 = tpu.matmul %0, %45, %cst_33 {dimension_numbers = #tpu.dot_dimension_numbers<[1], [0], [0], [1], [0, 0, 1, 1], [], []>} : vector<8x36xf32>, vector<36x256xf32>, vector<8x256xf32> -> vector<8x256xf32>
    %47 = vector.broadcast %2 : vector<8x1xf32> to vector<8x256xf32>
    %48 = arith.addf %46, %47 : vector<8x256xf32>
    %cst_34 = arith.constant 0.000000e+00 : f32
    %49 = vector.broadcast %cst_34 : f32 to vector<8x256xf32>
    %50 = arith.maximumf %48, %49 : vector<8x256xf32>
    %c255_i32_35 = arith.constant 255 : i32
    %51 = tpu.dynamic_rotate %50 by %c255_i32_35 dim 1 : vector<8x256xf32>, i32 -> vector<8x256xf32>
    %c254_i32_36 = arith.constant 254 : i32
    %52 = tpu.dynamic_rotate %50 by %c254_i32_36 dim 1 : vector<8x256xf32>, i32 -> vector<8x256xf32>
    %c240_i32_37 = arith.constant 240 : i32
    %53 = tpu.dynamic_rotate %50 by %c240_i32_37 dim 1 : vector<8x256xf32>, i32 -> vector<8x256xf32>
    %c239_i32_38 = arith.constant 239 : i32
    %54 = tpu.dynamic_rotate %50 by %c239_i32_38 dim 1 : vector<8x256xf32>, i32 -> vector<8x256xf32>
    %c238_i32_39 = arith.constant 238 : i32
    %55 = tpu.dynamic_rotate %50 by %c238_i32_39 dim 1 : vector<8x256xf32>, i32 -> vector<8x256xf32>
    %c224_i32_40 = arith.constant 224 : i32
    %56 = tpu.dynamic_rotate %50 by %c224_i32_40 dim 1 : vector<8x256xf32>, i32 -> vector<8x256xf32>
    %c223_i32_41 = arith.constant 223 : i32
    %57 = tpu.dynamic_rotate %50 by %c223_i32_41 dim 1 : vector<8x256xf32>, i32 -> vector<8x256xf32>
    %c222_i32_42 = arith.constant 222 : i32
    %58 = tpu.dynamic_rotate %50 by %c222_i32_42 dim 1 : vector<8x256xf32>, i32 -> vector<8x256xf32>
    %59 = tpu.concatenate %50, %51, %52, %53, %54, %55, %56, %57, %58 in 0 : vector<8x256xf32>, vector<8x256xf32>, vector<8x256xf32>, vector<8x256xf32>, vector<8x256xf32>, vector<8x256xf32>, vector<8x256xf32>, vector<8x256xf32>, vector<8x256xf32> -> vector<72x256xf32>
    %cst_43 = arith.constant dense<0.000000e+00> : vector<8x256xf32>
    %60 = tpu.matmul %1, %59, %cst_43 {dimension_numbers = #tpu.dot_dimension_numbers<[1], [0], [0], [1], [0, 0, 1, 1], [], []>} : vector<8x72xf32>, vector<72x256xf32>, vector<8x256xf32> -> vector<8x256xf32>
    %61 = vector.broadcast %3 : vector<8x1xf32> to vector<8x256xf32>
    %62 = arith.addf %60, %61 : vector<8x256xf32>
    %c1_44 = arith.constant 1 : index
    %c0_45 = arith.constant 0 : index
    %c0_46 = arith.constant 0 : index
    %63 = vector.load %arg6[%c1_44, %c0_45, %c0_46] : memref<2x8x256xf32, #tpu.memory_space<vmem>>, vector<1x8x256xf32>
    %64 = vector.shape_cast %63 : vector<1x8x256xf32> to vector<8x256xf32>
    %65 = vector.shape_cast %62 : vector<8x256xf32> to vector<1x8x256xf32>
    tpu.vector_store %arg6[%c1_44, %c0_45, %c0_46], %65 {strides = array<i32>} : memref<2x8x256xf32, #tpu.memory_space<vmem>>, vector<1x8x256xf32>,
    return
  }
  func.func @transform_0(%arg0: i32) -> (i32, i32, i32) {
    %c0_i32 = arith.constant 0 : i32
    %c0_i32_0 = arith.constant 0 : i32
    %c0_i32_1 = arith.constant 0 : i32
    return %arg0, %c0_i32, %c0_i32_0 : i32, i32, i32
  }
  func.func @transform_1(%arg0: i32) -> (i32, i32) {
    %c0_i32 = arith.constant 0 : i32
    %c0_i32_0 = arith.constant 0 : i32
    %c0_i32_1 = arith.constant 0 : i32
    return %c0_i32, %c0_i32_0 : i32, i32
  }
  func.func @transform_2(%arg0: i32) -> (i32, i32) {
    %c0_i32 = arith.constant 0 : i32
    %c0_i32_0 = arith.constant 0 : i32
    %c0_i32_1 = arith.constant 0 : i32
    return %c0_i32, %c0_i32_0 : i32, i32
  }
  func.func @transform_3(%arg0: i32) -> (i32, i32) {
    %c0_i32 = arith.constant 0 : i32
    %c0_i32_0 = arith.constant 0 : i32
    %c0_i32_1 = arith.constant 0 : i32
    return %c0_i32, %c0_i32_0 : i32, i32
  }
  func.func @transform_4(%arg0: i32) -> (i32, i32) {
    %c0_i32 = arith.constant 0 : i32
    %c0_i32_0 = arith.constant 0 : i32
    %c0_i32_1 = arith.constant 0 : i32
    return %c0_i32, %c0_i32_0 : i32, i32
  }
  func.func @transform_5(%arg0: i32) -> (i32, i32, i32) {
    %c0_i32 = arith.constant 0 : i32
    %c0_i32_0 = arith.constant 0 : i32
    %c0_i32_1 = arith.constant 0 : i32
    return %arg0, %c0_i32, %c0_i32_0 : i32, i32, i32
  }
}

</mosaic_0001>

<llo_original>
// kernel: tpu_custom_call.1
$region0: #{tpu_custom_call.1}
  #allocation0 [shape = 'u32[]', space=smem, size = 0x4, offset = 0x4, fixed_abs, tag = 'smem constant byte address 0x4 - core index']
  #allocation1 [shape = 'u32[72,128]{1,0:T(1,128)}', space=vmem, size = 0x9000, scoped, tag = 'internal scratch']
  %s0 = inlined_call_operand.vmem [shape: f32[2,4,256], index: 0, kind: input, shape index: {}]
  %s1 = inlined_call_operand.hbm [shape: f32[8,36], index: 1, kind: input, shape index: {}]
  %s2 = inlined_call_operand.vmem [shape: f32[8,1], index: 2, kind: input, shape index: {}]
  %s3 = inlined_call_operand.hbm [shape: f32[8,72], index: 3, kind: input, shape index: {}]
  %s4 = inlined_call_operand.vmem [shape: f32[8,1], index: 4, kind: input, shape index: {}]
  %s5 = inlined_call_operand.hbm [shape: f32[2,8,256], index: 5, kind: output, shape index: {}]
  %s6 = sld [smem:[#allocation0]]
  $region38: #{tpu_custom_call.1} parent=0
    _
  %s8 = ssub.s32 1, %s6
  %s9 = scalar_select 0, %s8, %s6
  $region1: #{tpu_custom_call.1} parent=0
    #allocation2 [shape = 'u8[4096]{0}', space=vmem, size = 0x1000, scoped, tag = 'input window, operand 1, single buffered']
    #allocation3 [shape = 's32[1]{0}', space=sflag, size = 0x4, scoped, tag = 'scoped memory for tpu_custom_call.1']
    #allocation4 [shape = 's32[1]{0}', space=sflag, size = 0x4, scoped, tag = 'scoped memory for tpu_custom_call.1']
    #allocation5 [shape = 'u8[4096]{0}', space=vmem, size = 0x1000, scoped, tag = 'input window, operand 3, single buffered']
    #allocation6 [shape = 's32[1]{0}', space=sflag, size = 0x4, scoped, tag = 'scoped memory for tpu_custom_call.1']
    #allocation7 [shape = 'u8[16384]{0}', space=vmem, size = 0x4000, scoped, tag = 'output window, operand 0, single buffered']
    %10 = vsyncpa [#allocation3], 0
    %11 = vsyncpa [#allocation6], 0
    %12 = vsyncpa [#allocation4], 0
    // Predicated region
    $region2: #{tpu_custom_call.1} parent=1 // pred_check
      _
    $region3: #{tpu_custom_call.1} parent=1 // pred_check_branch
      %14 = sbr.rel (0) target = $region5
    $region4: #{tpu_custom_call.1} parent=1 // pred_region
      _
    $region5: #{tpu_custom_call.1} parent=1 // pred_fallthru
      _
    // Predicated region
    $region6: #{tpu_custom_call.1} parent=1 // pred_check
      _
    $region7: #{tpu_custom_call.1} parent=1 // pred_check_branch
      %16 = sbr.rel (0) target = $region9
    $region8: #{tpu_custom_call.1} parent=1 // pred_region
      %18 = vsyncadd [#allocation3], 0
      %s20 = sshll.u32 %s1, 4
      %s21 = int_to_ptr.hbm [resolvable:$true] %s20
      %s22 = sshll.u32 [#allocation2], 4
      %s23 = int_to_ptr.vmem [resolvable:$true] %s22
      %25 = dma.hbm_to_vmem [thread:$0]  %s21, 128, %s23, [#allocation3]
    $region9: #{tpu_custom_call.1} parent=1 // pred_fallthru
      _
    // Predicated region
    $region10: #{tpu_custom_call.1} parent=1 // pred_check
      _
    $region11: #{tpu_custom_call.1} parent=1 // pred_check_branch
      %27 = sbr.rel (0) target = $region13
    $region12: #{tpu_custom_call.1} parent=1 // pred_region
      _
    $region13: #{tpu_custom_call.1} parent=1 // pred_fallthru
      _
    // Predicated region
    $region14: #{tpu_custom_call.1} parent=1 // pred_check
      _
    $region15: #{tpu_custom_call.1} parent=1 // pred_check_branch
      %29 = sbr.rel (0) target = $region17
    $region16: #{tpu_custom_call.1} parent=1 // pred_region
      %31 = vsyncadd [#allocation6], 0
      %s33 = sshll.u32 %s3, 4
      %s34 = int_to_ptr.hbm [resolvable:$true] %s33
      %s35 = sshll.u32 [#allocation5], 4
      %s36 = int_to_ptr.vmem [resolvable:$true] %s35
      %38 = dma.hbm_to_vmem [thread:$0]  %s34, 128, %s36, [#allocation6]
    $region17: #{tpu_custom_call.1} parent=1 // pred_fallthru
      _
    // Predicated region
    $region18: #{tpu_custom_call.1} parent=1 // pred_check
      _
    $region19: #{tpu_custom_call.1} parent=1 // pred_check_branch
      %40 = sbr.rel (0) target = $region21
    $region20: #{tpu_custom_call.1} parent=1 // pred_region
      _
    $region21: #{tpu_custom_call.1} parent=1 // pred_fallthru
      _
    // Predicated region
    $region22: #{tpu_custom_call.1} parent=1 // pred_check
      _
    $region23: #{tpu_custom_call.1} parent=1 // pred_check_branch
      %42 = sbr.rel (0) target = $region25
    $region24: #{tpu_custom_call.1} parent=1 // pred_region
      %44 = dma.done [#allocation3], 128
    $region25: #{tpu_custom_call.1} parent=1 // pred_fallthru
      _
    // Predicated region
    $region26: #{tpu_custom_call.1} parent=1 // pred_check
      _
    $region27: #{tpu_custom_call.1} parent=1 // pred_check_branch
      %46 = sbr.rel (0) target = $region29
    $region28: #{tpu_custom_call.1} parent=1 // pred_region
      %48 = dma.done [#allocation6], 128
    $region29: #{tpu_custom_call.1} parent=1 // pred_fallthru
      _
    %v49 = vld [vmem:[#allocation2] sm:$0xff]
    %v50 = vld [vmem:[#allocation5] sm:$0xff]
    %v51 = vld [vmem:[%s2] sm:$0xff]
    %v52 = vld [vmem:[%s4] sm:$0xff]
    %v53 = vld [vmem:[%s0] sm:$0xff]
    %55 = vst [vmem:[#allocation1] ss:$2 sm:$0xff] %v53
    %v56 = vld.sshfl [vmem:[#allocation1] sm:$0xff pattern:$0x75316420]
    %v57 = vld.sshfl [vmem:[#allocation1 + $0x8] sm:$0xff pattern:$0x75316420]
    %60 = vrot.lane.b32.xlu0 %v56, 127
    %v61 = vpop.permute.xlu0 %60
    %62 = vrot.lane.b32.xlu0 %v57, 127
    %v63 = vpop.permute.xlu0 %62
    %v64 = vlaneseq
    %v65 = vand.u32 %v64, 127
    %vm66 = vcmp.lt.s32.totalorder %v65, 127
    %v67 = vsel %vm66, %v61, %v63
    %v68 = vsel %vm66, %v63, %v61
    %69 = vst [vmem:[#allocation1] ss:$2 sm:$0xff] %v53
    %v70 = vld.sshfl [vmem:[#allocation1] sm:$0xff pattern:$0x75316420]
    %v71 = vld.sshfl [vmem:[#allocation1 + $0x8] sm:$0xff pattern:$0x75316420]
    %74 = vrot.lane.b32.xlu0 %v70, 126
    %v75 = vpop.permute.xlu0 %74
    %76 = vrot.lane.b32.xlu0 %v71, 126
    %v77 = vpop.permute.xlu0 %76
    %vm78 = vcmp.lt.s32.totalorder %v65, 126
    %v79 = vsel %vm78, %v75, %v77
    %v80 = vsel %vm78, %v77, %v75
    %81 = vst [vmem:[#allocation1] ss:$2 sm:$0xff] %v53
    %v82 = vld.sshfl [vmem:[#allocation1] sm:$0xff pattern:$0x75316420]
    %v83 = vld.sshfl [vmem:[#allocation1 + $0x8] sm:$0xff pattern:$0x75316420]
    %86 = vrot.lane.b32.xlu0 %v82, 112
    %v87 = vpop.permute.xlu0 %86
    %88 = vrot.lane.b32.xlu0 %v83, 112
    %v89 = vpop.permute.xlu0 %88
    %vm90 = vcmp.lt.s32.totalorder %v65, 112
    %v91 = vsel %vm90, %v87, %v89
    %v92 = vsel %vm90, %v89, %v87
    %93 = vst [vmem:[#allocation1] ss:$2 sm:$0xff] %v53
    %v94 = vld.sshfl [vmem:[#allocation1] sm:$0xff pattern:$0x75316420]
    %v95 = vld.sshfl [vmem:[#allocation1 + $0x8] sm:$0xff pattern:$0x75316420]
    %98 = vrot.lane.b32.xlu0 %v94, 111
    %v99 = vpop.permute.xlu0 %98
    %100 = vrot.lane.b32.xlu0 %v95, 111
    %v101 = vpop.permute.xlu0 %100
    %vm102 = vcmp.lt.s32.totalorder %v65, 111
    %v103 = vsel %vm102, %v99, %v101
    %v104 = vsel %vm102, %v101, %v99
    %105 = vst [vmem:[#allocation1] ss:$2 sm:$0xff] %v53
    %v106 = vld.sshfl [vmem:[#allocation1] sm:$0xff pattern:$0x75316420]
    %v107 = vld.sshfl [vmem:[#allocation1 + $0x8] sm:$0xff pattern:$0x75316420]
    %110 = vrot.lane.b32.xlu0 %v106, 110
    %v111 = vpop.permute.xlu0 %110
    %112 = vrot.lane.b32.xlu0 %v107, 110
    %v113 = vpop.permute.xlu0 %112
    %vm114 = vcmp.lt.s32.totalorder %v65, 110
    %v115 = vsel %vm114, %v111, %v113
    %v116 = vsel %vm114, %v113, %v111
    %117 = vst [vmem:[#allocation1] ss:$2 sm:$0xff] %v53
    %v118 = vld.sshfl [vmem:[#allocation1] sm:$0xff pattern:$0x75316420]
    %v119 = vld.sshfl [vmem:[#allocation1 + $0x8] sm:$0xff pattern:$0x75316420]
    %122 = vrot.lane.b32.xlu0 %v118, 96
    %v123 = vpop.permute.xlu0 %122
    %124 = vrot.lane.b32.xlu0 %v119, 96
    %v125 = vpop.permute.xlu0 %124
    %vm126 = vcmp.lt.s32.totalorder %v65, 96
    %v127 = vsel %vm126, %v123, %v125
    %v128 = vsel %vm126, %v125, %v123
    %129 = vst [vmem:[#allocation1] ss:$2 sm:$0xff] %v53
    %v130 = vld.sshfl [vmem:[#allocation1] sm:$0xff pattern:$0x75316420]
    %v131 = vld.sshfl [vmem:[#allocation1 + $0x8] sm:$0xff pattern:$0x75316420]
    %134 = vrot.lane.b32.xlu0 %v130, 95
    %v135 = vpop.permute.xlu0 %134
    %136 = vrot.lane.b32.xlu0 %v131, 95
    %v137 = vpop.permute.xlu0 %136
    %vm138 = vcmp.lt.s32.totalorder %v65, 95
    %v139 = vsel %vm138, %v135, %v137
    %v140 = vsel %vm138, %v137, %v135
    %141 = vst [vmem:[#allocation1] ss:$2 sm:$0xff] %v53
    %v142 = vld.sshfl [vmem:[#allocation1] sm:$0xff pattern:$0x75316420]
    %v143 = vld.sshfl [vmem:[#allocation1 + $0x8] sm:$0xff pattern:$0x75316420]
    %146 = vrot.lane.b32.xlu0 %v142, 94
    %v147 = vpop.permute.xlu0 %146
    %148 = vrot.lane.b32.xlu0 %v143, 94
    %v149 = vpop.permute.xlu0 %148
    %vm150 = vcmp.lt.s32.totalorder %v65, 94
    %v151 = vsel %vm150, %v147, %v149
    %v152 = vsel %vm150, %v149, %v147
    %153 = vst [vmem:[#allocation1] ss:$2 sm:$0xff] %v53
    %v154 = vld.sshfl [vmem:[#allocation1] sm:$0xff pattern:$0x75316420]
    %v155 = vld.sshfl [vmem:[#allocation1 + $0x8] sm:$0xff pattern:$0x75316420]
    %v160 = vrot.slane %v67, 4
    %v161 = vrot.slane %v68, 4
    %v166 = vrot.slane %v91, 4
    %v167 = vrot.slane %v92, 4
    %v172 = vrot.slane %v115, 4
    %v173 = vrot.slane %v116, 4
    %v178 = vrot.slane %v139, 4
    %v179 = vrot.slane %v140, 4
    %vm182 = vcmask 1043456
    %v183 = vsel %vm182, %v154, %v160
    %v184 = vsel %vm182, %v155, %v161
    %v185 = vsel %vm182, %v79, %v166
    %v186 = vsel %vm182, %v80, %v167
    %v187 = vsel %vm182, %v103, %v172
    %v188 = vsel %vm182, %v104, %v173
    %v189 = vsel %vm182, %v127, %v178
    %v190 = vsel %vm182, %v128, %v179
    %192 = vset.pattern.permute.xlu0 0
    %193 = vperm.xlu0 %192, %v51
    %v194 = vpop.permute.xlu0 %193
    %vm196 = vcmask 293888
    %v198 = vsel %vm196, %v49, 0
    %v201 = vsel %vm182, %v151, 0
    %v204 = vsel %vm182, %v152, 0
    %206 = vmatpush.msra.mxu0 0.0
    %207 = vmatpush.msra.mxu0 0.0
    %208 = vmatpush.msra.mxu0 0.0
    %209 = vmatpush.msra.mxu0 0.0
    %210 = vmatpush.msra.mxu0 0.0
    %211 = vmatpush.msra.mxu0 0.0
    %212 = vmatpush.msra.mxu0 0.0
    %213 = vmatpush.msra.mxu0 0.0
    %214 = vmatpush.msra.mxu0 0.0
    %215 = vmatpush.msra.mxu0 0.0
    %216 = vmatpush.msra.mxu0 0.0
    %217 = vmatpush.msra.mxu0 %v201
    %218 = vmatpush.msra.mxu0 %v189
    %219 = vmatpush.msra.mxu0 %v187
    %220 = vmatpush.msra.mxu0 %v185
    %221 = vmatpush.msra.mxu0 %v183
    %222 = vmatmul.f32.gmra.mxu0 %v198
    %v223 = vpop.f32.mrf.mxu0
    %v224 = vadd.f32 %v194, %v223
    %225 = vdwg.mxu0
    %226 = vmatpush.msra.mxu0 0.0
    %227 = vmatpush.msra.mxu0 0.0
    %228 = vmatpush.msra.mxu0 0.0
    %229 = vmatpush.msra.mxu0 0.0
    %230 = vmatpush.msra.mxu0 0.0
    %231 = vmatpush.msra.mxu0 0.0
    %232 = vmatpush.msra.mxu0 0.0
    %233 = vmatpush.msra.mxu0 0.0
    %234 = vmatpush.msra.mxu0 0.0
    %235 = vmatpush.msra.mxu0 0.0
    %236 = vmatpush.msra.mxu0 0.0
    %237 = vmatpush.msra.mxu0 %v204
    %238 = vmatpush.msra.mxu0 %v190
    %239 = vmatpush.msra.mxu0 %v188
    %240 = vmatpush.msra.mxu0 %v186
    %241 = vmatpush.msra.mxu0 %v184
    %242 = vmatmul.f32.gmra.mxu0 %v198
    %v243 = vpop.f32.mrf.mxu0
    %v244 = vadd.f32 %v194, %v243
    %245 = vdwg.mxu0
    %v246 = vmax.f32 %v224, 0.0
    %v247 = vmax.f32 %v244, 0.0
    %248 = vrot.lane.b32.xlu0 %v246, 127
    %v249 = vpop.permute.xlu0 %248
    %250 = vrot.lane.b32.xlu0 %v247, 127
    %v251 = vpop.permute.xlu0 %250
    %v252 = vsel %vm66, %v249, %v251
    %v253 = vsel %vm66, %v251, %v249
    %254 = vrot.lane.b32.xlu0 %v246, 126
    %v255 = vpop.permute.xlu0 %254
    %256 = vrot.lane.b32.xlu0 %v247, 126
    %v257 = vpop.permute.xlu0 %256
    %v258 = vsel %vm78, %v255, %v257
    %v259 = vsel %vm78, %v257, %v255
    %260 = vrot.lane.b32.xlu0 %v246, 112
    %v261 = vpop.permute.xlu0 %260
    %262 = vrot.lane.b32.xlu0 %v247, 112
    %v263 = vpop.permute.xlu0 %262
    %v264 = vsel %vm90, %v261, %v263
    %v265 = vsel %vm90, %v263, %v261
    %266 = vrot.lane.b32.xlu0 %v246, 111
    %v267 = vpop.permute.xlu0 %266
    %268 = vrot.lane.b32.xlu0 %v247, 111
    %v269 = vpop.permute.xlu0 %268
    %v270 = vsel %vm102, %v267, %v269
    %v271 = vsel %vm102, %v269, %v267
    %272 = vrot.lane.b32.xlu0 %v246, 110
    %v273 = vpop.permute.xlu0 %272
    %274 = vrot.lane.b32.xlu0 %v247, 110
    %v275 = vpop.permute.xlu0 %274
    %v276 = vsel %vm114, %v273, %v275
    %v277 = vsel %vm114, %v275, %v273
    %278 = vrot.lane.b32.xlu0 %v246, 96
    %v279 = vpop.permute.xlu0 %278
    %280 = vrot.lane.b32.xlu0 %v247, 96
    %v281 = vpop.permute.xlu0 %280
    %v282 = vsel %vm126, %v279, %v281
    %v283 = vsel %vm126, %v281, %v279
    %284 = vrot.lane.b32.xlu0 %v246, 95
    %v285 = vpop.permute.xlu0 %284
    %286 = vrot.lane.b32.xlu0 %v247, 95
    %v287 = vpop.permute.xlu0 %286
    %v288 = vsel %vm138, %v285, %v287
    %v289 = vsel %vm138, %v287, %v285
    %290 = vrot.lane.b32.xlu0 %v246, 94
    %v291 = vpop.permute.xlu0 %290
    %292 = vrot.lane.b32.xlu0 %v247, 94
    %v293 = vpop.permute.xlu0 %292
    %v294 = vsel %vm150, %v291, %v293
    %v295 = vsel %vm150, %v293, %v291
    %297 = vset.pattern.permute.xlu0 0
    %298 = vperm.xlu0 %297, %v52
    %v299 = vpop.permute.xlu0 %298
    %vm301 = vcmask 588800
    %v303 = vsel %vm301, %v50, 0
    %305 = vmatpush.msra.mxu0 0.0
    %306 = vmatpush.msra.mxu0 0.0
    %307 = vmatpush.msra.mxu0 0.0
    %308 = vmatpush.msra.mxu0 0.0
    %309 = vmatpush.msra.mxu0 0.0
    %310 = vmatpush.msra.mxu0 0.0
    %311 = vmatpush.msra.mxu0 0.0
    %312 = vmatpush.msra.mxu0 %v294
    %313 = vmatpush.msra.mxu0 %v288
    %314 = vmatpush.msra.mxu0 %v282
    %315 = vmatpush.msra.mxu0 %v276
    %316 = vmatpush.msra.mxu0 %v270
    %317 = vmatpush.msra.mxu0 %v264
    %318 = vmatpush.msra.mxu0 %v258
    %319 = vmatpush.msra.mxu0 %v252
    %320 = vmatpush.msra.mxu0 %v246
    %321 = vmatmul.f32.gmra.mxu0 %v303
    %v322 = vpop.f32.mrf.mxu0
    %v323 = vadd.f32 %v299, %v322
    %324 = vdwg.mxu0
    %325 = vmatpush.msra.mxu0 0.0
    %326 = vmatpush.msra.mxu0 0.0
    %327 = vmatpush.msra.mxu0 0.0
    %328 = vmatpush.msra.mxu0 0.0
    %329 = vmatpush.msra.mxu0 0.0
    %330 = vmatpush.msra.mxu0 0.0
    %331 = vmatpush.msra.mxu0 0.0
    %332 = vmatpush.msra.mxu0 %v295
    %333 = vmatpush.msra.mxu0 %v289
    %334 = vmatpush.msra.mxu0 %v283
    %335 = vmatpush.msra.mxu0 %v277
    %336 = vmatpush.msra.mxu0 %v271
    %337 = vmatpush.msra.mxu0 %v265
    %338 = vmatpush.msra.mxu0 %v259
    %339 = vmatpush.msra.mxu0 %v253
    %340 = vmatpush.msra.mxu0 %v247
    %341 = vmatmul.f32.gmra.mxu0 %v303
    %v342 = vpop.f32.mrf.mxu0
    %v343 = vadd.f32 %v299, %v342
    %344 = vdwg.mxu0
    %345 = vst [vmem:[#allocation7] sm:$0xff] %v323
    %346 = vst [vmem:[#allocation7 + $0x8] sm:$0xff] %v343
    %s347 = scalar_lea.vmem %s0, 8
    %v348 = vld [vmem:[%s347] sm:$0xff]
    %350 = vst [vmem:[#allocation1] ss:$2 sm:$0xff] %v348
    %v351 = vld.sshfl [vmem:[#allocation1] sm:$0xff pattern:$0x75316420]
    %v352 = vld.sshfl [vmem:[#allocation1 + $0x8] sm:$0xff pattern:$0x75316420]
    %355 = vrot.lane.b32.xlu0 %v351, 127
    %v356 = vpop.permute.xlu0 %355
    %357 = vrot.lane.b32.xlu0 %v352, 127
    %v358 = vpop.permute.xlu0 %357
    %v359 = vsel %vm66, %v356, %v358
    %v360 = vsel %vm66, %v358, %v356
    %361 = vst [vmem:[#allocation1] ss:$2 sm:$0xff] %v348
    %v362 = vld.sshfl [vmem:[#allocation1] sm:$0xff pattern:$0x75316420]
    %v363 = vld.sshfl [vmem:[#allocation1 + $0x8] sm:$0xff pattern:$0x75316420]
    %366 = vrot.lane.b32.xlu0 %v362, 126
    %v367 = vpop.permute.xlu0 %366
    %368 = vrot.lane.b32.xlu0 %v363, 126
    %v369 = vpop.permute.xlu0 %368
    %v370 = vsel %vm78, %v367, %v369
    %v371 = vsel %vm78, %v369, %v367
    %372 = vst [vmem:[#allocation1] ss:$2 sm:$0xff] %v348
    %v373 = vld.sshfl [vmem:[#allocation1] sm:$0xff pattern:$0x75316420]
    %v374 = vld.sshfl [vmem:[#allocation1 + $0x8] sm:$0xff pattern:$0x75316420]
    %377 = vrot.lane.b32.xlu0 %v373, 112
    %v378 = vpop.permute.xlu0 %377
    %379 = vrot.lane.b32.xlu0 %v374, 112
    %v380 = vpop.permute.xlu0 %379
    %v381 = vsel %vm90, %v378, %v380
    %v382 = vsel %vm90, %v380, %v378
    %383 = vst [vmem:[#allocation1] ss:$2 sm:$0xff] %v348
    %v384 = vld.sshfl [vmem:[#allocation1] sm:$0xff pattern:$0x75316420]
    %v385 = vld.sshfl [vmem:[#allocation1 + $0x8] sm:$0xff pattern:$0x75316420]
    %388 = vrot.lane.b32.xlu0 %v384, 111
    %v389 = vpop.permute.xlu0 %388
    %390 = vrot.lane.b32.xlu0 %v385, 111
    %v391 = vpop.permute.xlu0 %390
    %v392 = vsel %vm102, %v389, %v391
    %v393 = vsel %vm102, %v391, %v389
    %394 = vst [vmem:[#allocation1] ss:$2 sm:$0xff] %v348
    %v395 = vld.sshfl [vmem:[#allocation1] sm:$0xff pattern:$0x75316420]
    %v396 = vld.sshfl [vmem:[#allocation1 + $0x8] sm:$0xff pattern:$0x75316420]
    %399 = vrot.lane.b32.xlu0 %v395, 110
    %v400 = vpop.permute.xlu0 %399
    %401 = vrot.lane.b32.xlu0 %v396, 110
    %v402 = vpop.permute.xlu0 %401
    %v403 = vsel %vm114, %v400, %v402
    %v404 = vsel %vm114, %v402, %v400
    %405 = vst [vmem:[#allocation1] ss:$2 sm:$0xff] %v348
    %v406 = vld.sshfl [vmem:[#allocation1] sm:$0xff pattern:$0x75316420]
    %v407 = vld.sshfl [vmem:[#allocation1 + $0x8] sm:$0xff pattern:$0x75316420]
    %410 = vrot.lane.b32.xlu0 %v406, 96
    %v411 = vpop.permute.xlu0 %410
    %412 = vrot.lane.b32.xlu0 %v407, 96
    %v413 = vpop.permute.xlu0 %412
    %v414 = vsel %vm126, %v411, %v413
    %v415 = vsel %vm126, %v413, %v411
    %416 = vst [vmem:[#allocation1] ss:$2 sm:$0xff] %v348
    %v417 = vld.sshfl [vmem:[#allocation1] sm:$0xff pattern:$0x75316420]
    %v418 = vld.sshfl [vmem:[#allocation1 + $0x8] sm:$0xff pattern:$0x75316420]
    %421 = vrot.lane.b32.xlu0 %v417, 95
    %v422 = vpop.permute.xlu0 %421
    %423 = vrot.lane.b32.xlu0 %v418, 95
    %v424 = vpop.permute.xlu0 %423
    %v425 = vsel %vm138, %v422, %v424
    %v426 = vsel %vm138, %v424, %v422
    %427 = vst [vmem:[#allocation1] ss:$2 sm:$0xff] %v348
    %v428 = vld.sshfl [vmem:[#allocation1] sm:$0xff pattern:$0x75316420]
    %v429 = vld.sshfl [vmem:[#allocation1 + $0x8] sm:$0xff pattern:$0x75316420]
    %432 = vrot.lane.b32.xlu0 %v428, 94
    %v433 = vpop.permute.xlu0 %432
    %434 = vrot.lane.b32.xlu0 %v429, 94
    %v435 = vpop.permute.xlu0 %434
    %v436 = vsel %vm150, %v433, %v435
    %v437 = vsel %vm150, %v435, %v433
    %438 = vst [vmem:[#allocation1] ss:$2 sm:$0xff] %v348
    %v439 = vld.sshfl [vmem:[#allocation1] sm:$0xff pattern:$0x75316420]
    %v440 = vld.sshfl [vmem:[#allocation1 + $0x8] sm:$0xff pattern:$0x75316420]
    %v445 = vrot.slane %v359, 4
    %v446 = vrot.slane %v360, 4
    %v451 = vrot.slane %v381, 4
    %v452 = vrot.slane %v382, 4
    %v457 = vrot.slane %v403, 4
    %v458 = vrot.slane %v404, 4
    %v463 = vrot.slane %v425, 4
    %v464 = vrot.slane %v426, 4
    %v467 = vsel %vm182, %v439, %v445
    %v468 = vsel %vm182, %v440, %v446
    %v469 = vsel %vm182, %v370, %v451
    %v470 = vsel %vm182, %v371, %v452
    %v471 = vsel %vm182, %v392, %v457
    %v472 = vsel %vm182, %v393, %v458
    %v473 = vsel %vm182, %v414, %v463
    %v474 = vsel %vm182, %v415, %v464
    %v476 = vsel %vm182, %v436, 0
    %v479 = vsel %vm182, %v437, 0
    %481 = vmatpush.msra.mxu0 0.0
    %482 = vmatpush.msra.mxu0 0.0
    %483 = vmatpush.msra.mxu0 0.0
    %484 = vmatpush.msra.mxu0 0.0
    %485 = vmatpush.msra.mxu0 0.0
    %486 = vmatpush.msra.mxu0 0.0
    %487 = vmatpush.msra.mxu0 0.0
    %488 = vmatpush.msra.mxu0 0.0
    %489 = vmatpush.msra.mxu0 0.0
    %490 = vmatpush.msra.mxu0 0.0
    %491 = vmatpush.msra.mxu0 0.0
    %492 = vmatpush.msra.mxu0 %v476
    %493 = vmatpush.msra.mxu0 %v473
    %494 = vmatpush.msra.mxu0 %v471
    %495 = vmatpush.msra.mxu0 %v469
    %496 = vmatpush.msra.mxu0 %v467
    %497 = vmatmul.f32.gmra.mxu0 %v198
    %v498 = vpop.f32.mrf.mxu0
    %v499 = vadd.f32 %v194, %v498
    %500 = vdwg.mxu0
    %501 = vmatpush.msra.mxu0 0.0
    %502 = vmatpush.msra.mxu0 0.0
    %503 = vmatpush.msra.mxu0 0.0
    %504 = vmatpush.msra.mxu0 0.0
    %505 = vmatpush.msra.mxu0 0.0
    %506 = vmatpush.msra.mxu0 0.0
    %507 = vmatpush.msra.mxu0 0.0
    %508 = vmatpush.msra.mxu0 0.0
    %509 = vmatpush.msra.mxu0 0.0
    %510 = vmatpush.msra.mxu0 0.0
    %511 = vmatpush.msra.mxu0 0.0
    %512 = vmatpush.msra.mxu0 %v479
    %513 = vmatpush.msra.mxu0 %v474
    %514 = vmatpush.msra.mxu0 %v472
    %515 = vmatpush.msra.mxu0 %v470
    %516 = vmatpush.msra.mxu0 %v468
    %517 = vmatmul.f32.gmra.mxu0 %v198
    %v518 = vpop.f32.mrf.mxu0
    %v519 = vadd.f32 %v194, %v518
    %520 = vdwg.mxu0
    %v521 = vmax.f32 %v499, 0.0
    %v522 = vmax.f32 %v519, 0.0
    %523 = vrot.lane.b32.xlu0 %v521, 127
    %v524 = vpop.permute.xlu0 %523
    %525 = vrot.lane.b32.xlu0 %v522, 127
    %v526 = vpop.permute.xlu0 %525
    %v527 = vsel %vm66, %v524, %v526
    %v528 = vsel %vm66, %v526, %v524
    %529 = vrot.lane.b32.xlu0 %v521, 126
    %v530 = vpop.permute.xlu0 %529
    %531 = vrot.lane.b32.xlu0 %v522, 126
    %v532 = vpop.permute.xlu0 %531
    %v533 = vsel %vm78, %v530, %v532
    %v534 = vsel %vm78, %v532, %v530
    %535 = vrot.lane.b32.xlu0 %v521, 112
    %v536 = vpop.permute.xlu0 %535
    %537 = vrot.lane.b32.xlu0 %v522, 112
    %v538 = vpop.permute.xlu0 %537
    %v539 = vsel %vm90, %v536, %v538
    %v540 = vsel %vm90, %v538, %v536
    %541 = vrot.lane.b32.xlu0 %v521, 111
    %v542 = vpop.permute.xlu0 %541
    %543 = vrot.lane.b32.xlu0 %v522, 111
    %v544 = vpop.permute.xlu0 %543
    %v545 = vsel %vm102, %v542, %v544
    %v546 = vsel %vm102, %v544, %v542
    %547 = vrot.lane.b32.xlu0 %v521, 110
    %v548 = vpop.permute.xlu0 %547
    %549 = vrot.lane.b32.xlu0 %v522, 110
    %v550 = vpop.permute.xlu0 %549
    %v551 = vsel %vm114, %v548, %v550
    %v552 = vsel %vm114, %v550, %v548
    %553 = vrot.lane.b32.xlu0 %v521, 96
    %v554 = vpop.permute.xlu0 %553
    %555 = vrot.lane.b32.xlu0 %v522, 96
    %v556 = vpop.permute.xlu0 %555
    %v557 = vsel %vm126, %v554, %v556
    %v558 = vsel %vm126, %v556, %v554
    %559 = vrot.lane.b32.xlu0 %v521, 95
    %v560 = vpop.permute.xlu0 %559
    %561 = vrot.lane.b32.xlu0 %v522, 95
    %v562 = vpop.permute.xlu0 %561
    %v563 = vsel %vm138, %v560, %v562
    %v564 = vsel %vm138, %v562, %v560
    %565 = vrot.lane.b32.xlu0 %v521, 94
    %v566 = vpop.permute.xlu0 %565
    %567 = vrot.lane.b32.xlu0 %v522, 94
    %v568 = vpop.permute.xlu0 %567
    %v569 = vsel %vm150, %v566, %v568
    %v570 = vsel %vm150, %v568, %v566
    %571 = vmatpush.msra.mxu0 0.0
    %572 = vmatpush.msra.mxu0 0.0
    %573 = vmatpush.msra.mxu0 0.0
    %574 = vmatpush.msra.mxu0 0.0
    %575 = vmatpush.msra.mxu0 0.0
    %576 = vmatpush.msra.mxu0 0.0
    %577 = vmatpush.msra.mxu0 0.0
    %578 = vmatpush.msra.mxu0 %v569
    %579 = vmatpush.msra.mxu0 %v563
    %580 = vmatpush.msra.mxu0 %v557
    %581 = vmatpush.msra.mxu0 %v551
    %582 = vmatpush.msra.mxu0 %v545
    %583 = vmatpush.msra.mxu0 %v539
    %584 = vmatpush.msra.mxu0 %v533
    %585 = vmatpush.msra.mxu0 %v527
    %586 = vmatpush.msra.mxu0 %v521
    %587 = vmatmul.f32.gmra.mxu0 %v303
    %v588 = vpop.f32.mrf.mxu0
    %v589 = vadd.f32 %v299, %v588
    %590 = vdwg.mxu0
    %591 = vmatpush.msra.mxu0 0.0
    %592 = vmatpush.msra.mxu0 0.0
    %593 = vmatpush.msra.mxu0 0.0
    %594 = vmatpush.msra.mxu0 0.0
    %595 = vmatpush.msra.mxu0 0.0
    %596 = vmatpush.msra.mxu0 0.0
    %597 = vmatpush.msra.mxu0 0.0
    %598 = vmatpush.msra.mxu0 %v570
    %599 = vmatpush.msra.mxu0 %v564
    %600 = vmatpush.msra.mxu0 %v558
    %601 = vmatpush.msra.mxu0 %v552
    %602 = vmatpush.msra.mxu0 %v546
    %603 = vmatpush.msra.mxu0 %v540
    %604 = vmatpush.msra.mxu0 %v534
    %605 = vmatpush.msra.mxu0 %v528
    %606 = vmatpush.msra.mxu0 %v522
    %607 = vmatmul.f32.gmra.mxu0 %v303
    %v608 = vpop.f32.mrf.mxu0
    %v609 = vadd.f32 %v299, %v608
    %610 = vdwg.mxu0
    %s611 = scalar_lea.vmem [#allocation7], 16
    %612 = vst [vmem:[%s611] sm:$0xff] %v589
    %613 = vst [vmem:[%s611 + $0x8] sm:$0xff] %v609
    // Predicated region
    $region30: #{tpu_custom_call.1} parent=1 // pred_check
      _
    $region31: #{tpu_custom_call.1} parent=1 // pred_check_branch
      %615 = sbr.rel (0) target = $region33
    $region32: #{tpu_custom_call.1} parent=1 // pred_region
      %617 = vsyncadd [#allocation4], 0
      %s618 = sshll.u32 [#allocation7], 4
      %s619 = int_to_ptr.vmem [resolvable:$true] %s618
      %s620 = sshll.u32 %s5, 4
      %s621 = int_to_ptr.hbm [resolvable:$true] %s620
      %626 = dma.vmem_to_hbm [thread:$0]  %s619, 512, %s621, [#allocation4], 256, 256, 16
    $region33: #{tpu_custom_call.1} parent=1 // pred_fallthru
      _
    // Predicated region
    $region34: #{tpu_custom_call.1} parent=1 // pred_check
      _
    $region35: #{tpu_custom_call.1} parent=1 // pred_check_branch
      %628 = sbr.rel (0) target = $region37
    $region36: #{tpu_custom_call.1} parent=1 // pred_region
      %630 = dma.done [#allocation4], 512
    $region37: #{tpu_custom_call.1} parent=1 // pred_fallthru
      _
    %631 = vsyncpa [#allocation3], 1
    %632 = vsyncpa [#allocation6], 1
    %633 = vsyncpa [#allocation4], 1

</llo_original>
